<compile_context>
chip_gen: v5e
topology: v5e:2x2
jax: 0.10.0
libtpu: 0.0.40
codegen_flags: <defaults>
</compile_context>

<pallas_src>
import functools

import jax
import jax.numpy as jnp
from jax.experimental import pallas as pl
from jax.experimental.pallas import tpu as pltpu


# -----------------------------------------------------------------------------
# Slab layout helpers (shared by fold_params and the kernel, all Python ints)
# -----------------------------------------------------------------------------
def _rup8(x):
    return (x + 7) // 8 * 8


def _gin_layer_offsets(base, d_in, hid):
    """Row offsets of [w1 | w2 | (b1,b2,s3,t3)] inside the GIN slab."""
    a = _rup8(d_in)
    h8 = _rup8(hid)
    w1_off = base
    w2_off = base + a
    vec_off = base + a + h8
    next_base = vec_off + 8
    return w1_off, w2_off, vec_off, next_base


def _pad_rows(x, rows):
    return jnp.pad(x, ((0, rows - x.shape[0]), (0, 0)))


# -----------------------------------------------------------------------------
# Fused kernel: per graph -> 2 GIN layers + graph max-pooling + prediction head.
#
# Per GIN layer:
#   agg = A @ h                      (neighbor 'sum' pooling, bf16 MXU, f32 acc)
#   z   = (1 + eps) * h + agg        (f32 VPU)
#   z1  = relu(z @ W1' + b1')        (MLP hidden layer, internal BN folded)
#   z2  = relu(z1 @ W2' + b2')       (MLP linear out + ApplyNodeFunc BN folded)
#   h'  = relu(z2 * s3 + t3)         (outer batch_norms[i] + ReLU)
# Prediction (Dropout == identity):
#   score = bcat + maxpool(h0)@W0 + maxpool(h1)@W1 + maxpool(h2)@W2
# -----------------------------------------------------------------------------
def _fused_forward_kernel(adj_ref, h_ref, gin_ref, pred_ref, out_ref, score_ref,
                          *, eps0, eps1, din, hid, odim):
    del odim  # implied by pred_ref / score_ref shapes
    a0 = _rup8(din)
    h8 = _rup8(hid)

    adj = adj_ref[...]          # (N, N) bf16 (0/1, exact)
    h0 = h_ref[...]             # (N, din) f32
    g = gin_ref[...]            # (Rg, hid) f32 packed GIN slab
    p = pred_ref[...]           # (Rp, odim) f32 packed prediction slab

    w1a_off, w2a_off, va_off, base1 = _gin_layer_offsets(0, din, hid)
    w1b_off, w2b_off, vb_off, _ = _gin_layer_offsets(base1, hid, hid)

    def layer_params(w1_off, d_in, w2_off, v_off):
        return (g[w1_off:w1_off + d_in, :],
                g[w2_off:w2_off + hid, :],
                g[v_off + 0:v_off + 1, :],
                g[v_off + 1:v_off + 2, :],
                g[v_off + 2:v_off + 3, :],
                g[v_off + 3:v_off + 4, :])

    def gin(h, eps, w1, w2, b1, b2, s3, t3):
        # Neighbor 'sum' aggregation on the MXU (bf16 inputs, f32 accumulate).
        agg = jnp.dot(adj, h.astype(jnp.bfloat16),
                      preferred_element_type=jnp.float32)
        z = (1.0 + eps) * h + agg
        # MLP hidden layer (internal BN folded into w1/b1) + ReLU.
        z1 = jnp.maximum(
            jnp.dot(z, w1, preferred_element_type=jnp.float32) + b1, 0.0)
        # MLP output linear (ApplyNodeFunc BN folded into w2/b2) + ReLU.
        z2 = jnp.maximum(
            jnp.dot(z1, w2, preferred_element_type=jnp.float32) + b2, 0.0)
        # Outer batch_norms[i] (cannot fold across the ReLU) + ReLU.
        return jnp.maximum(z2 * s3 + t3, 0.0)

    # Prediction-head slices (static offsets).
    w0p = p[0:din, :]
    w1p = p[a0:a0 + hid, :]
    w2p = p[a0 + h8:a0 + h8 + hid, :]
    bcat = p[a0 + 2 * h8:a0 + 2 * h8 + 1, :]

    # Split accumulated prediction dots: each is issued as soon as its hidden
    # rep is ready, so they overlap with the following GIN layer's compute.
    p0 = jnp.max(h0, axis=0, keepdims=True)
    score = bcat + jnp.dot(p0, w0p, preferred_element_type=jnp.float32)

    h1 = gin(h0, eps0, *layer_params(w1a_off, din, w2a_off, va_off))
    p1 = jnp.max(h1, axis=0, keepdims=True)
    score = score + jnp.dot(p1, w1p, preferred_element_type=jnp.float32)

    h2 = gin(h1, eps1, *layer_params(w1b_off, hid, w2b_off, vb_off))
    p2 = jnp.max(h2, axis=0, keepdims=True)

    out_ref[...] = h2
    score_ref[...] = score + jnp.dot(p2, w2p, preferred_element_type=jnp.float32)


def uvnet_graph_forward(adj, h, gin_slab, pred_slab, eps):
    """Single pallas_call over a batch of graphs (grid axis = graph id)."""
    B, N, _ = adj.shape
    din = h.shape[2]
    hid = gin_slab.shape[1]
    odim = pred_slab.shape[1]

    kernel = functools.partial(_fused_forward_kernel, eps0=eps[0], eps1=eps[1],
                               din=din, hid=hid, odim=odim)

    flops = B * (
        2 * N * N * din + 2 * N * N * hid            # aggregations
        + 2 * N * din * hid + 2 * N * hid * hid      # layer-0 MLP
        + 4 * N * hid * hid                          # layer-1 MLP
        + 2 * din * odim + 4 * hid * odim)           # prediction head
    bytes_accessed = (B * N * N * 2 + B * N * din * 4
                      + gin_slab.size * 4 + pred_slab.size * 4
                      + B * N * hid * 4 + B * odim * 4)

    out, score = pl.pallas_call(
        kernel,
        grid=(B,),
        in_specs=[
            pl.BlockSpec((None, N, N), lambda b: (b, 0, 0)),      # adj[b]
            pl.BlockSpec((None, N, din), lambda b: (b, 0, 0)),    # h[b]
            pl.BlockSpec(gin_slab.shape, lambda b: (0, 0)),       # resident slab
            pl.BlockSpec(pred_slab.shape, lambda b: (0, 0)),      # resident slab
        ],
        out_specs=(
            pl.BlockSpec((None, N, hid), lambda b: (b, 0, 0)),
            pl.BlockSpec((None, 1, odim), lambda b: (b, 0, 0)),
        ),
        out_shape=(jax.ShapeDtypeStruct((B, N, hid), jnp.float32),
                   jax.ShapeDtypeStruct((B, 1, odim), jnp.float32)),
        compiler_params=pltpu.CompilerParams(
            dimension_semantics=("parallel",)),
        cost_estimate=pl.CostEstimate(flops=flops, transcendentals=0,
                                      bytes_accessed=bytes_accessed),
    )(adj.astype(jnp.bfloat16), h, gin_slab, pred_slab)
    return out, score


uvnet_graph_forward_jit = jax.jit(uvnet_graph_forward, static_argnames=("eps",))


# -----------------------------------------------------------------------------
# Parameter construction (deterministic, mirrors the PyTorch module shapes)
# -----------------------------------------------------------------------------
def _make_linear(key, din, dout):
    k1, k2 = jax.random.split(key)
    bound = 1.0 / (din ** 0.5)
    w = jax.random.uniform(k1, (din, dout), minval=-bound, maxval=bound)
    b = jax.random.uniform(k2, (1, dout), minval=-bound, maxval=bound)
    return w.astype(jnp.float32), b.astype(jnp.float32)


def _make_folded_bn(key, dim, bn_eps=1e-5):
    k1, k2, k3, k4 = jax.random.split(key, 4)
    gamma = 1.0 + 0.1 * jax.random.normal(k1, (dim,))
    beta = 0.1 * jax.random.normal(k2, (dim,))
    rmean = 0.1 * jax.random.normal(k3, (dim,))
    rvar = jax.random.uniform(k4, (dim,), minval=0.5, maxval=1.5)
    scale = gamma / jnp.sqrt(rvar + bn_eps)
    shift = beta - rmean * scale
    return (scale.reshape(1, dim).astype(jnp.float32),
            shift.reshape(1, dim).astype(jnp.float32))


def init_params(key, input_dim, hidden_dim, output_dim, num_layers=3):
    params = {"gin": [], "pred": []}
    dims = [input_dim] + [hidden_dim] * (num_layers - 1)
    for layer in range(num_layers - 1):
        din = dims[layer]
        key, k1, k2, k3, k4, k5 = jax.random.split(key, 6)
        w1, b1 = _make_linear(k1, din, hidden_dim)
        s1, t1 = _make_folded_bn(k2, hidden_dim)       # MLP internal BN
        w2, b2 = _make_linear(k3, hidden_dim, hidden_dim)
        s2, t2 = _make_folded_bn(k4, hidden_dim)       # ApplyNodeFunc BN
        s3, t3 = _make_folded_bn(k5, hidden_dim)       # outer batch_norms[i]
        params["gin"].append(dict(eps=0.1 * (layer + 1),
                                  w1=w1, b1=b1, s1=s1, t1=t1,
                                  w2=w2, b2=b2, s2=s2, t2=t2,
                                  s3=s3, t3=t3))
    for layer in range(num_layers):
        din = input_dim if layer == 0 else hidden_dim
        key, k = jax.random.split(key)
        w, b = _make_linear(k, din, output_dim)
        params["pred"].append(dict(w=w, b=b))
    return params


def fold_params(params):
    """Fold eval-mode BN into the preceding Linear weights (f32) and pack
    everything into two sublane-aligned slabs; extract static eps constants."""
    hid = params["gin"][0]["w2"].shape[1]
    blocks, eps = [], []
    for lp in params["gin"]:
        w1 = lp["w1"] * lp["s1"]                 # (Din, H) * (1, H)
        b1 = lp["b1"] * lp["s1"] + lp["t1"]
        w2 = lp["w2"] * lp["s2"]
        b2 = lp["b2"] * lp["s2"] + lp["t2"]
        vec = jnp.concatenate([b1, b2, lp["s3"], lp["t3"]], axis=0)   # (4, H)
        blocks.append(jnp.concatenate(
            [_pad_rows(w1, _rup8(w1.shape[0])),
             _pad_rows(w2, _rup8(hid)),
             _pad_rows(vec, 8)], axis=0))
        eps.append(float(lp["eps"]))
    gin_slab = jnp.concatenate(blocks, axis=0).astype(jnp.float32)

    din = params["pred"][0]["w"].shape[0]
    bcat = (params["pred"][0]["b"] + params["pred"][1]["b"]
            + params["pred"][2]["b"])
    pred_slab = jnp.concatenate(
        [_pad_rows(params["pred"][0]["w"], _rup8(din)),
         _pad_rows(params["pred"][1]["w"], _rup8(hid)),
         _pad_rows(params["pred"][2]["w"], _rup8(hid)),
         _pad_rows(bcat, 8)], axis=0).astype(jnp.float32)
    return gin_slab, pred_slab, tuple(eps)


# -----------------------------------------------------------------------------
# Pure-JAX reference (un-folded params, exact f32) for correctness checking
# -----------------------------------------------------------------------------
def ref_forward(adj, h, params):
    hp = jax.lax.Precision.HIGHEST
    hidden_rep = [h]
    x = h
    for lp in params["gin"]:
        agg = jnp.dot(adj, x, precision=hp)
        z = (1.0 + lp["eps"]) * x + agg
        z1 = jnp.maximum(
            (jnp.dot(z, lp["w1"], precision=hp) + lp["b1"]) * lp["s1"] + lp["t1"],
            0.0)
        z2 = jnp.dot(z1, lp["w2"], precision=hp) + lp["b2"]
        z2 = jnp.maximum(z2 * lp["s2"] + lp["t2"], 0.0)
        x = jnp.maximum(z2 * lp["s3"] + lp["t3"], 0.0)
        hidden_rep.append(x)
    score = jnp.zeros((1, params["pred"][0]["w"].shape[1]), jnp.float32)
    for hr, p in zip(hidden_rep, params["pred"]):
        pooled = jnp.max(hr, axis=0, keepdims=True)
        score = score + jnp.dot(pooled, p["w"], precision=hp) + p["b"]
    return hidden_rep[-1], score


if __name__ == "__main__":
    B, N, INPUT_DIM, HIDDEN_DIM, OUTPUT_DIM = 4, 64, 16, 32, 8

    key = jax.random.PRNGKey(0)
    k_adj, k_h, k_p = jax.random.split(key, 3)

    a = jax.random.bernoulli(k_adj, 0.15, (B, N, N)).astype(jnp.float32)
    adj = jnp.maximum(a, jnp.swapaxes(a, 1, 2)) * (1.0 - jnp.eye(N, dtype=jnp.float32))
    h = jax.random.normal(k_h, (B, N, INPUT_DIM), dtype=jnp.float32)

    params = init_params(k_p, INPUT_DIM, HIDDEN_DIM, OUTPUT_DIM, num_layers=3)
    gin_slab, pred_slab, eps = fold_params(params)

    out, score = uvnet_graph_forward_jit(adj, h, gin_slab, pred_slab, eps=eps)
    out, score = jax.block_until_ready((out, score))
    assert out.shape == (B, N, HIDDEN_DIM) and score.shape == (B, 1, OUTPUT_DIM)

    # bf16 MXU inputs on the aggregation path introduce ~0.4% relative error vs
    # the exact-f32 reference, hence the 2e-2 tolerance.
    for b in range(B):
        out_ref, score_ref = ref_forward(adj[b], h[b], params)
        assert jnp.allclose(out[b], out_ref, rtol=2e-2, atol=2e-2)
        assert jnp.allclose(score[b], score_ref, rtol=2e-2, atol=2e-2)

    print("KERNEL_OK")
</pallas_src>

<mosaic_0001>
module attributes {stable_mosaic.version = 11 : i64} {
  func.func @_fused_forward_kernel(%arg0: i32, %arg1: memref<1x64x64xbf16, #tpu.memory_space<vmem>>, %arg2: memref<1x64x16xf32, #tpu.memory_space<vmem>>, %arg3: memref<128x32xf32, #tpu.memory_space<vmem>>, %arg4: memref<88x8xf32, #tpu.memory_space<vmem>>, %arg5: memref<1x64x32xf32, #tpu.memory_space<vmem>>, %arg6: memref<1x1x8xf32, #tpu.memory_space<vmem>>) attributes {dimension_semantics = [#tpu.dimension_semantics<parallel>], iteration_bounds = array<i64: 4>, scalar_prefetch = 0 : i64, scratch_operands = 0 : i64, tpu.core_type = #tpu.core_type<tc>, window_params = [{transform_indices = @transform_0, window_bounds = array<i64: 1, 64, 64>}, {transform_indices = @transform_1, window_bounds = array<i64: 1, 64, 16>}, {pipeline_mode = #tpu.pipeline_mode<synchronous>, transform_indices = @transform_2, window_bounds = array<i64: 128, 32>}, {pipeline_mode = #tpu.pipeline_mode<synchronous>, transform_indices = @transform_3, window_bounds = array<i64: 88, 8>}, {transform_indices = @transform_4, window_bounds = array<i64: 1, 64, 32>}, {transform_indices = @transform_5, window_bounds = array<i64: 1, 1, 8>}]} {
    %c0 = arith.constant 0 : index
    %c0_0 = arith.constant 0 : index
    %c0_1 = arith.constant 0 : index
    %0 = vector.load %arg1[%c0, %c0_0, %c0_1] : memref<1x64x64xbf16, #tpu.memory_space<vmem>>, vector<1x64x64xbf16>
    %1 = vector.shape_cast %0 : vector<1x64x64xbf16> to vector<64x64xbf16>
    %c0_2 = arith.constant 0 : index
    %c0_3 = arith.constant 0 : index
    %c0_4 = arith.constant 0 : index
    %2 = vector.load %arg2[%c0_2, %c0_3, %c0_4] : memref<1x64x16xf32, #tpu.memory_space<vmem>>, vector<1x64x16xf32>
    %3 = vector.shape_cast %2 : vector<1x64x16xf32> to vector<64x16xf32>
    %c0_5 = arith.constant 0 : index
    %c0_6 = arith.constant 0 : index
    %4 = vector.load %arg3[%c0_5, %c0_6] : memref<128x32xf32, #tpu.memory_space<vmem>>, vector<128x32xf32>
    %c0_7 = arith.constant 0 : index
    %c0_8 = arith.constant 0 : index
    %5 = vector.load %arg4[%c0_7, %c0_8] : memref<88x8xf32, #tpu.memory_space<vmem>>, vector<88x8xf32>
    %6 = vector.extract_strided_slice %5 {offsets = [0, 0], sizes = [16, 8], strides = [1, 1]} : vector<88x8xf32> to vector<16x8xf32>
    %7 = vector.extract_strided_slice %5 {offsets = [16, 0], sizes = [32, 8], strides = [1, 1]} : vector<88x8xf32> to vector<32x8xf32>
    %8 = vector.extract_strided_slice %5 {offsets = [48, 0], sizes = [32, 8], strides = [1, 1]} : vector<88x8xf32> to vector<32x8xf32>
    %9 = vector.extract_strided_slice %5 {offsets = [80, 0], sizes = [1, 8], strides = [1, 1]} : vector<88x8xf32> to vector<1x8xf32>
    %cst = arith.constant dense<0xFF800000> : vector<16xf32>
    %10 = vector.multi_reduction <maximumf>, %3, %cst [0] : vector<64x16xf32> to vector<16xf32>
    %11 = vector.shape_cast %10 : vector<16xf32> to vector<1x16xf32>
    %cst_9 = arith.constant dense<0.000000e+00> : vector<1x8xf32>
    %12 = tpu.matmul %11, %6, %cst_9 {dimension_numbers = #tpu.dot_dimension_numbers<[1], [0], [0], [1], [0, 0, 1, 1], [], []>} : vector<1x16xf32>, vector<16x8xf32>, vector<1x8xf32> -> vector<1x8xf32>
    %13 = arith.addf %9, %12 : vector<1x8xf32>
    %14 = vector.extract_strided_slice %4 {offsets = [0, 0], sizes = [16, 32], strides = [1, 1]} : vector<128x32xf32> to vector<16x32xf32>
    %15 = vector.extract_strided_slice %4 {offsets = [16, 0], sizes = [32, 32], strides = [1, 1]} : vector<128x32xf32> to vector<32x32xf32>
    %16 = vector.extract_strided_slice %4 {offsets = [48, 0], sizes = [1, 32], strides = [1, 1]} : vector<128x32xf32> to vector<1x32xf32>
    %17 = vector.extract_strided_slice %4 {offsets = [49, 0], sizes = [1, 32], strides = [1, 1]} : vector<128x32xf32> to vector<1x32xf32>
    %18 = vector.extract_strided_slice %4 {offsets = [50, 0], sizes = [1, 32], strides = [1, 1]} : vector<128x32xf32> to vector<1x32xf32>
    %19 = vector.extract_strided_slice %4 {offsets = [51, 0], sizes = [1, 32], strides = [1, 1]} : vector<128x32xf32> to vector<1x32xf32>
    %20 = arith.truncf %3 : vector<64x16xf32> to vector<64x16xbf16>
    %cst_10 = arith.constant dense<0.000000e+00> : vector<64x16xf32>
    %21 = tpu.matmul %1, %20, %cst_10 {dimension_numbers = #tpu.dot_dimension_numbers<[1], [0], [0], [1], [0, 0, 1, 1], [], []>} : vector<64x64xbf16>, vector<64x16xbf16>, vector<64x16xf32> -> vector<64x16xf32>
    %cst_11 = arith.constant 1.100000e+00 : f32
    %22 = vector.broadcast %cst_11 : f32 to vector<64x16xf32>
    %23 = arith.mulf %22, %3 : vector<64x16xf32>
    %24 = arith.addf %23, %21 : vector<64x16xf32>
    %cst_12 = arith.constant dense<0.000000e+00> : vector<64x32xf32>
    %25 = tpu.matmul %24, %14, %cst_12 {dimension_numbers = #tpu.dot_dimension_numbers<[1], [0], [0], [1], [0, 0, 1, 1], [], []>} : vector<64x16xf32>, vector<16x32xf32>, vector<64x32xf32> -> vector<64x32xf32>
    %26 = vector.broadcast %16 : vector<1x32xf32> to vector<64x32xf32>
    %27 = arith.addf %25, %26 : vector<64x32xf32>
    %cst_13 = arith.constant 0.000000e+00 : f32
    %28 = vector.broadcast %cst_13 : f32 to vector<64x32xf32>
    %29 = arith.maximumf %27, %28 : vector<64x32xf32>
    %cst_14 = arith.constant dense<0.000000e+00> : vector<64x32xf32>
    %30 = tpu.matmul %29, %15, %cst_14 {dimension_numbers = #tpu.dot_dimension_numbers<[1], [0], [0], [1], [0, 0, 1, 1], [], []>} : vector<64x32xf32>, vector<32x32xf32>, vector<64x32xf32> -> vector<64x32xf32>
    %31 = vector.broadcast %17 : vector<1x32xf32> to vector<64x32xf32>
    %32 = arith.addf %30, %31 : vector<64x32xf32>
    %cst_15 = arith.constant 0.000000e+00 : f32
    %33 = vector.broadcast %cst_15 : f32 to vector<64x32xf32>
    %34 = arith.maximumf %32, %33 : vector<64x32xf32>
    %35 = vector.broadcast %18 : vector<1x32xf32> to vector<64x32xf32>
    %36 = arith.mulf %34, %35 : vector<64x32xf32>
    %37 = vector.broadcast %19 : vector<1x32xf32> to vector<64x32xf32>
    %38 = arith.addf %36, %37 : vector<64x32xf32>
    %cst_16 = arith.constant 0.000000e+00 : f32
    %39 = vector.broadcast %cst_16 : f32 to vector<64x32xf32>
    %40 = arith.maximumf %38, %39 : vector<64x32xf32>
    %cst_17 = arith.constant dense<0xFF800000> : vector<32xf32>
    %41 = vector.multi_reduction <maximumf>, %40, %cst_17 [0] : vector<64x32xf32> to vector<32xf32>
    %42 = vector.shape_cast %41 : vector<32xf32> to vector<1x32xf32>
    %cst_18 = arith.constant dense<0.000000e+00> : vector<1x8xf32>
    %43 = tpu.matmul %42, %7, %cst_18 {dimension_numbers = #tpu.dot_dimension_numbers<[1], [0], [0], [1], [0, 0, 1, 1], [], []>} : vector<1x32xf32>, vector<32x8xf32>, vector<1x8xf32> -> vector<1x8xf32>
    %44 = arith.addf %13, %43 : vector<1x8xf32>
    %45 = vector.extract_strided_slice %4 {offsets = [56, 0], sizes = [32, 32], strides = [1, 1]} : vector<128x32xf32> to vector<32x32xf32>
    %46 = vector.extract_strided_slice %4 {offsets = [88, 0], sizes = [32, 32], strides = [1, 1]} : vector<128x32xf32> to vector<32x32xf32>
    %47 = vector.extract_strided_slice %4 {offsets = [120, 0], sizes = [1, 32], strides = [1, 1]} : vector<128x32xf32> to vector<1x32xf32>
    %48 = vector.extract_strided_slice %4 {offsets = [121, 0], sizes = [1, 32], strides = [1, 1]} : vector<128x32xf32> to vector<1x32xf32>
    %49 = vector.extract_strided_slice %4 {offsets = [122, 0], sizes = [1, 32], strides = [1, 1]} : vector<128x32xf32> to vector<1x32xf32>
    %50 = vector.extract_strided_slice %4 {offsets = [123, 0], sizes = [1, 32], strides = [1, 1]} : vector<128x32xf32> to vector<1x32xf32>
    %51 = arith.truncf %40 : vector<64x32xf32> to vector<64x32xbf16>
    %cst_19 = arith.constant dense<0.000000e+00> : vector<64x32xf32>
    %52 = tpu.matmul %1, %51, %cst_19 {dimension_numbers = #tpu.dot_dimension_numbers<[1], [0], [0], [1], [0, 0, 1, 1], [], []>} : vector<64x64xbf16>, vector<64x32xbf16>, vector<64x32xf32> -> vector<64x32xf32>
    %cst_20 = arith.constant 1.200000e+00 : f32
    %53 = vector.broadcast %cst_20 : f32 to vector<64x32xf32>
    %54 = arith.mulf %53, %40 : vector<64x32xf32>
    %55 = arith.addf %54, %52 : vector<64x32xf32>
    %cst_21 = arith.constant dense<0.000000e+00> : vector<64x32xf32>
    %56 = tpu.matmul %55, %45, %cst_21 {dimension_numbers = #tpu.dot_dimension_numbers<[1], [0], [0], [1], [0, 0, 1, 1], [], []>} : vector<64x32xf32>, vector<32x32xf32>, vector<64x32xf32> -> vector<64x32xf32>
    %57 = vector.broadcast %47 : vector<1x32xf32> to vector<64x32xf32>
    %58 = arith.addf %56, %57 : vector<64x32xf32>
    %cst_22 = arith.constant 0.000000e+00 : f32
    %59 = vector.broadcast %cst_22 : f32 to vector<64x32xf32>
    %60 = arith.maximumf %58, %59 : vector<64x32xf32>
    %cst_23 = arith.constant dense<0.000000e+00> : vector<64x32xf32>
    %61 = tpu.matmul %60, %46, %cst_23 {dimension_numbers = #tpu.dot_dimension_numbers<[1], [0], [0], [1], [0, 0, 1, 1], [], []>} : vector<64x32xf32>, vector<32x32xf32>, vector<64x32xf32> -> vector<64x32xf32>
    %62 = vector.broadcast %48 : vector<1x32xf32> to vector<64x32xf32>
    %63 = arith.addf %61, %62 : vector<64x32xf32>
    %cst_24 = arith.constant 0.000000e+00 : f32
    %64 = vector.broadcast %cst_24 : f32 to vector<64x32xf32>
    %65 = arith.maximumf %63, %64 : vector<64x32xf32>
    %66 = vector.broadcast %49 : vector<1x32xf32> to vector<64x32xf32>
    %67 = arith.mulf %65, %66 : vector<64x32xf32>
    %68 = vector.broadcast %50 : vector<1x32xf32> to vector<64x32xf32>
    %69 = arith.addf %67, %68 : vector<64x32xf32>
    %cst_25 = arith.constant 0.000000e+00 : f32
    %70 = vector.broadcast %cst_25 : f32 to vector<64x32xf32>
    %71 = arith.maximumf %69, %70 : vector<64x32xf32>
    %cst_26 = arith.constant dense<0xFF800000> : vector<32xf32>
    %72 = vector.multi_reduction <maximumf>, %71, %cst_26 [0] : vector<64x32xf32> to vector<32xf32>
    %73 = vector.shape_cast %72 : vector<32xf32> to vector<1x32xf32>
    %c0_27 = arith.constant 0 : index
    %c0_28 = arith.constant 0 : index
    %c0_29 = arith.constant 0 : index
    %74 = vector.load %arg5[%c0_27, %c0_28, %c0_29] : memref<1x64x32xf32, #tpu.memory_space<vmem>>, vector<1x64x32xf32>
    %75 = vector.shape_cast %74 : vector<1x64x32xf32> to vector<64x32xf32>
    %76 = vector.shape_cast %71 : vector<64x32xf32> to vector<1x64x32xf32>
    tpu.vector_store %arg5[%c0_27, %c0_28, %c0_29], %76 {strides = array<i32>} : memref<1x64x32xf32, #tpu.memory_space<vmem>>, vector<1x64x32xf32>,
    %cst_30 = arith.constant dense<0.000000e+00> : vector<1x8xf32>
    %77 = tpu.matmul %73, %8, %cst_30 {dimension_numbers = #tpu.dot_dimension_numbers<[1], [0], [0], [1], [0, 0, 1, 1], [], []>} : vector<1x32xf32>, vector<32x8xf32>, vector<1x8xf32> -> vector<1x8xf32>
    %78 = arith.addf %44, %77 : vector<1x8xf32>
    %c0_31 = arith.constant 0 : index
    %c0_32 = arith.constant 0 : index
    %c0_33 = arith.constant 0 : index
    %79 = vector.load %arg6[%c0_31, %c0_32, %c0_33] : memref<1x1x8xf32, #tpu.memory_space<vmem>>, vector<1x1x8xf32>
    %80 = vector.shape_cast %79 : vector<1x1x8xf32> to vector<1x8xf32>
    %81 = vector.shape_cast %78 : vector<1x8xf32> to vector<1x1x8xf32>
    tpu.vector_store %arg6[%c0_31, %c0_32, %c0_33], %81 {strides = array<i32>} : memref<1x1x8xf32, #tpu.memory_space<vmem>>, vector<1x1x8xf32>,
    return
  }
  func.func @transform_0(%arg0: i32) -> (i32, i32, i32) {
    %c0_i32 = arith.constant 0 : i32
    %c0_i32_0 = arith.constant 0 : i32
    %c0_i32_1 = arith.constant 0 : i32
    return %arg0, %c0_i32, %c0_i32_0 : i32, i32, i32
  }
  func.func @transform_1(%arg0: i32) -> (i32, i32, i32) {
    %c0_i32 = arith.constant 0 : i32
    %c0_i32_0 = arith.constant 0 : i32
    %c0_i32_1 = arith.constant 0 : i32
    return %arg0, %c0_i32, %c0_i32_0 : i32, i32, i32
  }
  func.func @transform_2(%arg0: i32) -> (i32, i32) {
    %c0_i32 = arith.constant 0 : i32
    %c0_i32_0 = arith.constant 0 : i32
    %c0_i32_1 = arith.constant 0 : i32
    return %c0_i32, %c0_i32_0 : i32, i32
  }
  func.func @transform_3(%arg0: i32) -> (i32, i32) {
    %c0_i32 = arith.constant 0 : i32
    %c0_i32_0 = arith.constant 0 : i32
    %c0_i32_1 = arith.constant 0 : i32
    return %c0_i32, %c0_i32_0 : i32, i32
  }
  func.func @transform_4(%arg0: i32) -> (i32, i32, i32) {
    %c0_i32 = arith.constant 0 : i32
    %c0_i32_0 = arith.constant 0 : i32
    %c0_i32_1 = arith.constant 0 : i32
    return %arg0, %c0_i32, %c0_i32_0 : i32, i32, i32
  }
  func.func @transform_5(%arg0: i32) -> (i32, i32, i32) {
    %c0_i32 = arith.constant 0 : i32
    %c0_i32_0 = arith.constant 0 : i32
    %c0_i32_1 = arith.constant 0 : i32
    return %arg0, %c0_i32, %c0_i32_0 : i32, i32, i32
  }
}

</mosaic_0001>

<llo_original>
// kernel: uvnet_graph_forward.1
$region0: #{uvnet_graph_forward.1}
  #allocation0 [shape = 'u32[]', space=smem, size = 0x4, offset = 0x4, fixed_abs, tag = 'smem constant byte address 0x4 - core index']
  #allocation1 [shape = 'u32[72,128]{1,0:T(1,128)}', space=vmem, size = 0x9000, scoped, tag = 'internal scratch']
  %s0 = inlined_call_operand.vmem [shape: bf16[4,64,64], index: 0, kind: input, shape index: {}]
  %s1 = inlined_call_operand.vmem [shape: f32[4,64,16], index: 1, kind: input, shape index: {}]
  %s2 = inlined_call_operand.vmem [shape: f32[128,32], index: 2, kind: input, shape index: {}]
  %s3 = inlined_call_operand.vmem [shape: f32[88,8], index: 3, kind: input, shape index: {}]
  %s4 = inlined_call_operand.vmem [shape: f32[4,64,32], index: 4, kind: output, shape index: {0}]
  %s5 = inlined_call_operand.hbm [shape: f32[4,1,8], index: 5, kind: output, shape index: {1}]
  %6 = xla_tuple %s4, %s5
  %s7 = sld [smem:[#allocation0]]
  $region57: #{uvnet_graph_forward.1} parent=0
    _
  %s9 = ssub.s32 1, %s7
  %s10 = scalar_select 0, %s9, %s7
  $region1: #{uvnet_graph_forward.1} parent=0
    #allocation2 [shape = 'u8[1024]{0}', space=vmem, size = 0x400, scoped, tag = 'output window, operand 1']
    #allocation3 [shape = 's32[2]{0}', space=sflag, size = 0x8, scoped, tag = 'scoped memory for uvnet_graph_forward.1']
    %11 = vsyncpa [#allocation3], 0
    %s12 = scalar_lea.sflag [#allocation3], 1
    %13 = vsyncpa %s12, 0
    loop: start=0, step=1, limit=6
    $region2: #{uvnet_graph_forward.1} parent=1 // loop_pre_header
      _
    $region3: #{uvnet_graph_forward.1} parent=1 // loop_header
      %s15 = sphi 0, %s19
      %p16 = scmp.ge.s32.totalorder %s15, 6
      %s25 = sphi 0, %s27
      %s28 = sphi 0, %s25
      %s29 = sphi 0, %s28
      %s45 = sphi 0, %s29
      %s51 = sphi 0, %s53
      %s54 = sphi 0, %s51
      %s55 = sphi 0, %s54
      %s71 = sphi 0, %s55
      %s75 = sphi 0, %s75
      %s77 = sphi 0, %s75
      %s78 = sphi 0, %s77
      %s92 = sphi 0, %s78
      %s96 = sphi 0, %s96
      %s98 = sphi 0, %s96
      %s99 = sphi 0, %s98
      %s113 = sphi 0, %s99
      %s119 = sphi 0, %s121
      %s122 = sphi 0, %s119
      %s123 = sphi 0, %s122
      %s139 = sphi 0, %s123
      %s145 = sphi 0, %s147
      %s148 = sphi 0, %s145
      %s149 = sphi 0, %s148
      %s165 = sphi 0, %s149
    $region4: #{uvnet_graph_forward.1} parent=1 // loop_header_branch
      %18 = sbr.rel (%p16) target = $region8
    $region5: #{uvnet_graph_forward.1} parent=1 // loop_body
      %s20 = ssub.s32 %s15, 1
      %s21 = ssub.s32 %s15, 2
      %s22 = sadd.s32 %s15, 1
      %s23 = ssub.s32 %s15, %s22
      %p24 = scmp.eq.s32.totalorder %s23, 0
      %s26 = sadd.s32 %s25, 1
      %s27 = scalar_select %p24, %s25, %s26
      %p30 = pneg %p24
      %p31 = scmp.eq.s32.totalorder %s15, 3
      %p32 = por %p30, %p31
      %p33 = scmp.ne.s32.totalorder %s25, %s28
      %p34 = scmp.eq.s32.totalorder %s15, 0
      %p35 = por %p33, %p34
      %p36 = scmp.ne.s32.totalorder %s25, %s28
      %p37 = scmp.eq.s32.totalorder %s20, 3
      %p38 = por %p36, %p37
      %p39 = scmp.ne.s32.totalorder %s28, %s29
      %p40 = scmp.eq.s32.totalorder %s20, 0
      %p41 = por %p39, %p40
      %p42 = scmp.ne.s32.totalorder %s28, %s29
      %p43 = scmp.eq.s32.totalorder %s21, 3
      %p44 = por %p42, %p43
      %p46 = scmp.ne.s32.totalorder %s29, %s45
      %p47 = scmp.eq.s32.totalorder %s21, 0
      %p48 = por %p46, %p47
      %s49 = ssub.s32 %s15, %s22
      %p50 = scmp.eq.s32.totalorder %s49, 0
      %s52 = sadd.s32 %s51, 1
      %s53 = scalar_select %p50, %s51, %s52
      %p56 = pneg %p50
      %p57 = scmp.eq.s32.totalorder %s15, 3
      %p58 = por %p56, %p57
      %p59 = scmp.ne.s32.totalorder %s51, %s54
      %p60 = scmp.eq.s32.totalorder %s15, 0
      %p61 = por %p59, %p60
      %p62 = scmp.ne.s32.totalorder %s51, %s54
      %p63 = scmp.eq.s32.totalorder %s20, 3
      %p64 = por %p62, %p63
      %p65 = scmp.ne.s32.totalorder %s54, %s55
      %p66 = scmp.eq.s32.totalorder %s20, 0
      %p67 = por %p65, %p66
      %p68 = scmp.ne.s32.totalorder %s54, %s55
      %p69 = scmp.eq.s32.totalorder %s21, 3
      %p70 = por %p68, %p69
      %p72 = scmp.ne.s32.totalorder %s55, %s71
      %p73 = scmp.eq.s32.totalorder %s21, 0
      %p74 = por %p72, %p73
      %s76 = sadd.s32 %s75, 1
      %p79 = scmp.eq.s32.totalorder %s15, 3
      %p80 = scmp.ne.s32.totalorder %s75, %s77
      %p81 = scmp.eq.s32.totalorder %s15, 0
      %p82 = por %p80, %p81
      %p83 = scmp.ne.s32.totalorder %s75, %s77
      %p84 = scmp.eq.s32.totalorder %s20, 3
      %p85 = por %p83, %p84
      %p86 = scmp.ne.s32.totalorder %s77, %s78
      %p87 = scmp.eq.s32.totalorder %s20, 0
      %p88 = por %p86, %p87
      %p89 = scmp.ne.s32.totalorder %s77, %s78
      %p90 = scmp.eq.s32.totalorder %s21, 3
      %p91 = por %p89, %p90
      %p93 = scmp.ne.s32.totalorder %s78, %s92
      %p94 = scmp.eq.s32.totalorder %s21, 0
      %p95 = por %p93, %p94
      %s97 = sadd.s32 %s96, 1
      %p100 = scmp.eq.s32.totalorder %s15, 3
      %p101 = scmp.ne.s32.totalorder %s96, %s98
      %p102 = scmp.eq.s32.totalorder %s15, 0
      %p103 = por %p101, %p102
      %p104 = scmp.ne.s32.totalorder %s96, %s98
      %p105 = scmp.eq.s32.totalorder %s20, 3
      %p106 = por %p104, %p105
      %p107 = scmp.ne.s32.totalorder %s98, %s99
      %p108 = scmp.eq.s32.totalorder %s20, 0
      %p109 = por %p107, %p108
      %p110 = scmp.ne.s32.totalorder %s98, %s99
      %p111 = scmp.eq.s32.totalorder %s21, 3
      %p112 = por %p110, %p111
      %p114 = scmp.ne.s32.totalorder %s99, %s113
      %p115 = scmp.eq.s32.totalorder %s21, 0
      %p116 = por %p114, %p115
      %s117 = ssub.s32 %s15, %s22
      %p118 = scmp.eq.s32.totalorder %s117, 0
      %s120 = sadd.s32 %s119, 1
      %s121 = scalar_select %p118, %s119, %s120
      %p124 = pneg %p118
      %p125 = scmp.eq.s32.totalorder %s15, 3
      %p126 = por %p124, %p125
      %p127 = scmp.ne.s32.totalorder %s119, %s122
      %p128 = scmp.eq.s32.totalorder %s15, 0
      %p129 = por %p127, %p128
      %p130 = scmp.ne.s32.totalorder %s119, %s122
      %p131 = scmp.eq.s32.totalorder %s20, 3
      %p132 = por %p130, %p131
      %p133 = scmp.ne.s32.totalorder %s122, %s123
      %p134 = scmp.eq.s32.totalorder %s20, 0
      %p135 = por %p133, %p134
      %p136 = scmp.ne.s32.totalorder %s122, %s123
      %p137 = scmp.eq.s32.totalorder %s21, 3
      %p138 = por %p136, %p137
      %p140 = scmp.ne.s32.totalorder %s123, %s139
      %p141 = scmp.eq.s32.totalorder %s21, 0
      %p142 = por %p140, %p141
      %s143 = ssub.s32 %s15, %s22
      %p144 = scmp.eq.s32.totalorder %s143, 0
      %s146 = sadd.s32 %s145, 1
      %s147 = scalar_select %p144, %s145, %s146
      %p150 = pneg %p144
      %p151 = scmp.eq.s32.totalorder %s15, 3
      %p152 = por %p150, %p151
      %p153 = scmp.ne.s32.totalorder %s145, %s148
      %p154 = scmp.eq.s32.totalorder %s15, 0
      %p155 = por %p153, %p154
      %p156 = scmp.ne.s32.totalorder %s145, %s148
      %p157 = scmp.eq.s32.totalorder %s20, 3
      %p158 = por %p156, %p157
      %p159 = scmp.ne.s32.totalorder %s148, %s149
      %p160 = scmp.eq.s32.totalorder %s20, 0
      %p161 = por %p159, %p160
      %p162 = scmp.ne.s32.totalorder %s148, %s149
      %p163 = scmp.eq.s32.totalorder %s21, 3
      %p164 = por %p162, %p163
      %p166 = scmp.ne.s32.totalorder %s149, %s165
      %p167 = scmp.eq.s32.totalorder %s21, 0
      %p168 = por %p166, %p167
      %p169 = scmp.le.s32.totalorder 1, %s15
      %p170 = scmp.lt.s32.totalorder %s15, 5
      %p171 = pnand %p169, %p170
      %p172 = pneg %p171
      // Predicated region
      $region9: #{uvnet_graph_forward.1} parent=5 // pred_check
        _
      $region10: #{uvnet_graph_forward.1} parent=5 // pred_check_branch
        %174 = sbr.rel (%p171) target = $region12
      $region11: #{uvnet_graph_forward.1} parent=5 // pred_region
        %s175 = ssub.s32 %s15, 1
        // Predicated region
        $region13: #{uvnet_graph_forward.1} parent=11 // pred_check
          %p176 = pneg %p88
        $region14: #{uvnet_graph_forward.1} parent=11 // pred_check_branch
          %178 = sbr.rel (%p176) target = $region16
        $region15: #{uvnet_graph_forward.1} parent=11 // pred_region
          _
        $region16: #{uvnet_graph_forward.1} parent=11 // pred_fallthru
          _
        // Predicated region
        $region17: #{uvnet_graph_forward.1} parent=11 // pred_check
          %p179 = pneg %p109
        $region18: #{uvnet_graph_forward.1} parent=11 // pred_check_branch
          %181 = sbr.rel (%p179) target = $region20
        $region19: #{uvnet_graph_forward.1} parent=11 // pred_region
          _
        $region20: #{uvnet_graph_forward.1} parent=11 // pred_fallthru
          _
      $region12: #{uvnet_graph_forward.1} parent=5 // pred_fallthru
        _
      %p182 = scmp.lt.s32.totalorder %s15, 4
      // Predicated region
      $region21: #{uvnet_graph_forward.1} parent=5 // pred_check
        %p183 = pneg %p182
      $region22: #{uvnet_graph_forward.1} parent=5 // pred_check_branch
        %185 = sbr.rel (%p183) target = $region24
      $region23: #{uvnet_graph_forward.1} parent=5 // pred_region
        // Predicated region
        $region25: #{uvnet_graph_forward.1} parent=23 // pred_check
          %p186 = pneg %p35
        $region26: #{uvnet_graph_forward.1} parent=23 // pred_check_branch
          %188 = sbr.rel (%p186) target = $region28
        $region27: #{uvnet_graph_forward.1} parent=23 // pred_region
          %p189 = scmp.lt.s32.totalorder %s15, 3
          %s190 = scalar_select %p189, %s15, 3
          %s191 = smul.addr %s190, 8
          %s192 = smul.addr %s191, 4
          %s193 = scalar_lea.vmem %s0, %s192
        $region28: #{uvnet_graph_forward.1} parent=23 // pred_fallthru
          _
        // Predicated region
        $region29: #{uvnet_graph_forward.1} parent=23 // pred_check
          %p194 = pneg %p61
        $region30: #{uvnet_graph_forward.1} parent=23 // pred_check_branch
          %196 = sbr.rel (%p194) target = $region32
        $region31: #{uvnet_graph_forward.1} parent=23 // pred_region
          %p197 = scmp.lt.s32.totalorder %s15, 3
          %s198 = scalar_select %p197, %s15, 3
          %s199 = smul.addr %s198, 8
          %s200 = smul.addr %s199, 8
          %s201 = scalar_lea.vmem %s1, %s200
        $region32: #{uvnet_graph_forward.1} parent=23 // pred_fallthru
          _
      $region24: #{uvnet_graph_forward.1} parent=5 // pred_fallthru
        _
      %p202 = scmp.le.s32.totalorder 1, %s15
      %p203 = scmp.lt.s32.totalorder %s15, 5
      %p204 = pnand %p202, %p203
      %p205 = pneg %p204
      // Predicated region
      $region33: #{uvnet_graph_forward.1} parent=5 // pred_check
        _
      $region34: #{uvnet_graph_forward.1} parent=5 // pred_check_branch
        %207 = sbr.rel (%p204) target = $region36
      $region35: #{uvnet_graph_forward.1} parent=5 // pred_region
        %s208 = ssub.s32 %s15, 1
        %p209 = scmp.lt.s32.totalorder %s20, 3
        %s210 = scalar_select %p209, %s20, 3
        %s211 = smul.addr %s210, 8
        %s212 = smul.addr %s211, 4
        %s213 = scalar_lea.vmem %s0, %s212
        %p214 = pneg %p41
        %p215 = pneg %p38
        %p216 = scmp.lt.s32.totalorder %s20, 3
        %s217 = scalar_select %p216, %s20, 3
        %s218 = smul.addr %s217, 8
        %s219 = smul.addr %s218, 8
        %s220 = scalar_lea.vmem %s1, %s219
        %p221 = pneg %p67
        %p222 = pneg %p64
        %p223 = pneg %p88
        %p224 = pneg %p85
        %p225 = pneg %p109
        %p226 = pneg %p106
        %p227 = pneg %p135
        %p228 = pneg %p132
        %p229 = scmp.lt.s32.totalorder %s20, 3
        %s230 = scalar_select %p229, %s20, 3
        %s231 = smul.addr %s230, 8
        %s232 = smul.addr %s231, 8
        %s233 = scalar_lea.vmem %s4, %s232
        %p234 = pneg %p161
        %p235 = pneg %p158
        %s236 = sand.u32 %s148, 1
        %s237 = scalar_lea.sflag [#allocation3], %s236
        %s238 = sand.u32 %s148, 1
        %s239 = scalar_lea.vmem [#allocation2], %s238
        %p240 = scmp.lt.s32.totalorder %s20, 3
        %s241 = scalar_select %p240, %s20, 3
        %s242 = smul.addr %s241, 8
        %s243 = smul.addr %s242, 4
        %s244 = scalar_lea.vmem %s0, %s243
        %p245 = scmp.lt.s32.totalorder %s20, 3
        %s246 = scalar_select %p245, %s20, 3
        %s247 = smul.addr %s246, 8
        %s248 = smul.addr %s247, 8
        %s249 = scalar_lea.vmem %s1, %s248
        %p250 = scmp.lt.s32.totalorder %s20, 3
        %s251 = scalar_select %p250, %s20, 3
        %s252 = smul.addr %s251, 8
        %s253 = smul.addr %s252, 8
        %s254 = scalar_lea.vmem %s4, %s253
        %v256 = vld [vmem:[%s244] sm:$0xf]
        %v257 = vld [vmem:[%s244 + $0x4] sm:$0xf]
        %v258 = vld [vmem:[%s244 + $0x8] sm:$0xf]
        %v259 = vld [vmem:[%s244 + $0xc] sm:$0xf]
        %v260 = vld [vmem:[%s244 + $0x10] sm:$0xf]
        %v261 = vld [vmem:[%s244 + $0x14] sm:$0xf]
        %v262 = vld [vmem:[%s244 + $0x18] sm:$0xf]
        %v263 = vld [vmem:[%s244 + $0x1c] sm:$0xf]
        %v264 = vld [vmem:[%s249] sm:$0xff]
        %v265 = vld [vmem:[%s249 + $0x8] sm:$0xff]
        %v266 = vld [vmem:[%s249 + $0x10] sm:$0xff]
        %v267 = vld [vmem:[%s249 + $0x18] sm:$0xff]
        %v268 = vld [vmem:[%s249 + $0x20] sm:$0xff]
        %v269 = vld [vmem:[%s249 + $0x28] sm:$0xff]
        %v270 = vld [vmem:[%s249 + $0x30] sm:$0xff]
        %v271 = vld [vmem:[%s249 + $0x38] sm:$0xff]
        %v272 = vld [vmem:[%s2] sm:$0xff]
        %v273 = vld [vmem:[%s2 + $0x8] sm:$0xff]
        %v274 = vld [vmem:[%s2 + $0x10] sm:$0xff]
        %v275 = vld [vmem:[%s2 + $0x18] sm:$0xff]
        %v276 = vld [vmem:[%s2 + $0x20] sm:$0xff]
        %v277 = vld [vmem:[%s2 + $0x28] sm:$0xff]
        %v278 = vld [vmem:[%s2 + $0x30] sm:$0xff]
        %v279 = vld [vmem:[%s2 + $0x38] sm:$0xff]
        %v280 = vld [vmem:[%s2 + $0x40] sm:$0xff]
        %v281 = vld [vmem:[%s2 + $0x48] sm:$0xff]
        %v282 = vld [vmem:[%s2 + $0x50] sm:$0xff]
        %v283 = vld [vmem:[%s2 + $0x58] sm:$0xff]
        %v284 = vld [vmem:[%s2 + $0x60] sm:$0xff]
        %v285 = vld [vmem:[%s2 + $0x68] sm:$0xff]
        %v286 = vld [vmem:[%s2 + $0x70] sm:$0xff]
        %v287 = vld [vmem:[%s2 + $0x78] sm:$0xff]
        %v288 = vld [vmem:[%s3] sm:$0xff]
        %v289 = vld [vmem:[%s3 + $0x8] sm:$0xff]
        %v290 = vld [vmem:[%s3 + $0x10] sm:$0xff]
        %v291 = vld [vmem:[%s3 + $0x18] sm:$0xff]
        %v292 = vld [vmem:[%s3 + $0x20] sm:$0xff]
        %v293 = vld [vmem:[%s3 + $0x28] sm:$0xff]
        %v294 = vld [vmem:[%s3 + $0x30] sm:$0xff]
        %v295 = vld [vmem:[%s3 + $0x38] sm:$0xff]
        %v296 = vld [vmem:[%s3 + $0x40] sm:$0xff]
        %v297 = vld [vmem:[%s3 + $0x48] sm:$0xff]
        %v298 = vld [vmem:[%s3 + $0x50] sm:$0xff]
        %vm299 = vcmask 130048
        %v300 = vsel %vm299, %v264, -inf
        %v301 = vsel %vm299, %v265, -inf
        %v302 = vsel %vm299, %v266, -inf
        %v303 = vsel %vm299, %v267, -inf
        %v304 = vsel %vm299, %v268, -inf
        %v305 = vmax.f32 %v300, %v304
        %v306 = vsel %vm299, %v269, -inf
        %v307 = vmax.f32 %v301, %v306
        %v308 = vsel %vm299, %v270, -inf
        %v309 = vmax.f32 %v302, %v308
        %v310 = vsel %vm299, %v271, -inf
        %v311 = vmax.f32 %v303, %v310
        %v312 = vmax.f32 %v305, %v307
        %v313 = vmax.f32 %v309, %v311
        %v314 = vmax.f32 %v312, %v313
        %v315 = vrot.slane %v314, 4
        %v316 = vmax.f32 %v314, %v315
        %v317 = vrot.slane %v316, 2
        %v318 = vmax.f32 %v316, %v317
        %v319 = vrot.slane %v318, 1
        %v320 = vmax.f32 %v318, %v319
        %v322 = vsel %vm299, %v320, 0
        %324 = vmatpush.msra.mxu0 0.0
        %325 = vmatpush.msra.mxu0 0.0
        %326 = vmatpush.msra.mxu0 0.0
        %327 = vmatpush.msra.mxu0 0.0
        %328 = vmatpush.msra.mxu0 0.0
        %329 = vmatpush.msra.mxu0 0.0
        %330 = vmatpush.msra.mxu0 0.0
        %331 = vmatpush.msra.mxu0 0.0
        %332 = vmatpush.msra.mxu0 0.0
        %333 = vmatpush.msra.mxu0 0.0
        %334 = vmatpush.msra.mxu0 0.0
        %335 = vmatpush.msra.mxu0 0.0
        %336 = vmatpush.msra.mxu0 0.0
        %337 = vmatpush.msra.mxu0 0.0
        %338 = vmatpush.msra.mxu0 %v289
        %339 = vmatpush.msra.mxu0 %v288
        %340 = vmatmul.f32.gmra.mxu0 %v322
        %v341 = vpop.f32.mrf.mxu0
        %v342 = vadd.f32 0.0, %v341
        %343 = vdwg.mxu0
        %v344 = vadd.f32 %v298, %v342
        %v345 = vpack.c.bf16 %v265, %v264
        %v346 = vpack.c.bf16 %v267, %v266
        %v347 = vpack.c.bf16 %v269, %v268
        %v348 = vpack.c.bf16 %v271, %v270
        %v357 = vunpack.c.l.b16 %v256
        %v358 = vunpack.c.l.b16 %v257
        %v359 = vunpack.c.l.b16 %v258
        %v360 = vunpack.c.l.b16 %v259
        %v361 = vunpack.c.l.b16 %v260
        %v362 = vunpack.c.l.b16 %v261
        %v363 = vunpack.c.l.b16 %v262
        %v364 = vunpack.c.l.b16 %v263
        %v365 = vpack.c.b16 %v358, %v357
        %v366 = vpack.c.b16 %v360, %v359
        %v367 = vpack.c.b16 %v362, %v361
        %v368 = vpack.c.b16 %v364, %v363
        %vm369 = vcmask 523264
        %v371 = vsel %vm369, %v365, 0
        %v374 = vsel %vm369, %v366, 0
        %v377 = vsel %vm369, %v367, 0
        %v380 = vsel %vm369, %v368, 0
        %382 = vmatpush.bf16.msra.mxu0 0
        %383 = vmatpush.bf16.msra.mxu0 0
        %384 = vmatpush.bf16.msra.mxu0 0
        %385 = vmatpush.bf16.msra.mxu0 0
        %386 = vmatpush.bf16.msra.mxu0 %v348
        %387 = vmatpush.bf16.msra.mxu0 %v347
        %388 = vmatpush.bf16.msra.mxu0 %v346
        %389 = vmatpush.bf16.msra.mxu0 %v345
        %390 = vmatmul.bf16.gmra.mxu0 %v371
        %v391 = vpop.f32.mrf.mxu0
        %v392 = vadd.f32 0.0, %v391
        %v393 = vpop.f32.mrf.mxu0
        %v394 = vadd.f32 0.0, %v393
        %395 = vmatmul.bf16.gmra.mxu0 %v374
        %v396 = vpop.f32.mrf.mxu0
        %v397 = vadd.f32 0.0, %v396
        %v398 = vpop.f32.mrf.mxu0
        %v399 = vadd.f32 0.0, %v398
        %400 = vmatmul.bf16.gmra.mxu0 %v377
        %v401 = vpop.f32.mrf.mxu0
        %v402 = vadd.f32 0.0, %v401
        %v403 = vpop.f32.mrf.mxu0
        %v404 = vadd.f32 0.0, %v403
        %405 = vmatmul.bf16.gmra.mxu0 %v380
        %v406 = vpop.f32.mrf.mxu0
        %v407 = vadd.f32 0.0, %v406
        %v408 = vpop.f32.mrf.mxu0
        %v409 = vadd.f32 0.0, %v408
        %410 = vdwg.mxu0
        %v411 = vmul.f32 %v264, 1.1
        %v412 = vmul.f32 %v265, 1.1
        %v413 = vmul.f32 %v266, 1.1
        %v414 = vmul.f32 %v267, 1.1
        %v415 = vmul.f32 %v268, 1.1
        %v416 = vmul.f32 %v269, 1.1
        %v417 = vmul.f32 %v270, 1.1
        %v418 = vmul.f32 %v271, 1.1
        %v419 = vadd.f32 %v411, %v392
        %v420 = vadd.f32 %v412, %v394
        %v421 = vadd.f32 %v413, %v397
        %v422 = vadd.f32 %v414, %v399
        %v423 = vadd.f32 %v415, %v402
        %v424 = vadd.f32 %v416, %v404
        %v425 = vadd.f32 %v417, %v407
        %v426 = vadd.f32 %v418, %v409
        %v427 = vperm.slane %v278, 0
        %v429 = vsel %vm299, %v419, 0
        %v432 = vsel %vm299, %v420, 0
        %v435 = vsel %vm299, %v421, 0
        %v438 = vsel %vm299, %v422, 0
        %v441 = vsel %vm299, %v423, 0
        %v444 = vsel %vm299, %v424, 0
        %v447 = vsel %vm299, %v425, 0
        %v450 = vsel %vm299, %v426, 0
        %452 = vmatpush.msra.mxu0 0.0
        %453 = vmatpush.msra.mxu0 0.0
        %454 = vmatpush.msra.mxu0 0.0
        %455 = vmatpush.msra.mxu0 0.0
        %456 = vmatpush.msra.mxu0 0.0
        %457 = vmatpush.msra.mxu0 0.0
        %458 = vmatpush.msra.mxu0 0.0
        %459 = vmatpush.msra.mxu0 0.0
        %460 = vmatpush.msra.mxu0 0.0
        %461 = vmatpush.msra.mxu0 0.0
        %462 = vmatpush.msra.mxu0 0.0
        %463 = vmatpush.msra.mxu0 0.0
        %464 = vmatpush.msra.mxu0 0.0
        %465 = vmatpush.msra.mxu0 0.0
        %466 = vmatpush.msra.mxu0 %v273
        %467 = vmatpush.msra.mxu0 %v272
        %468 = vmatmul.f32.gmra.mxu0 %v429
        %v469 = vpop.f32.mrf.mxu0
        %v470 = vadd.f32 %v427, %v469
        %471 = vmatmul.f32.gmra.mxu0 %v432
        %v472 = vpop.f32.mrf.mxu0
        %v473 = vadd.f32 %v427, %v472
        %474 = vmatmul.f32.gmra.mxu0 %v435
        %v475 = vpop.f32.mrf.mxu0
        %v476 = vadd.f32 %v427, %v475
        %477 = vmatmul.f32.gmra.mxu0 %v438
        %v478 = vpop.f32.mrf.mxu0
        %v479 = vadd.f32 %v427, %v478
        %480 = vmatmul.f32.gmra.mxu0 %v441
        %v481 = vpop.f32.mrf.mxu0
        %v482 = vadd.f32 %v427, %v481
        %483 = vmatmul.f32.gmra.mxu0 %v444
        %v484 = vpop.f32.mrf.mxu0
        %v485 = vadd.f32 %v427, %v484
        %486 = vmatmul.f32.gmra.mxu0 %v447
        %v487 = vpop.f32.mrf.mxu0
        %v488 = vadd.f32 %v427, %v487
        %489 = vmatmul.f32.gmra.mxu0 %v450
        %v490 = vpop.f32.mrf.mxu0
        %v491 = vadd.f32 %v427, %v490
        %492 = vdwg.mxu0
        %v493 = vmax.f32 %v470, 0.0
        %v494 = vmax.f32 %v473, 0.0
        %v495 = vmax.f32 %v476, 0.0
        %v496 = vmax.f32 %v479, 0.0
        %v497 = vmax.f32 %v482, 0.0
        %v498 = vmax.f32 %v485, 0.0
        %v499 = vmax.f32 %v488, 0.0
        %v500 = vmax.f32 %v491, 0.0
        %v501 = vperm.slane %v278, 1
        %vm502 = vcmask 261120
        %v504 = vsel %vm502, %v493, 0
        %v507 = vsel %vm502, %v494, 0
        %v510 = vsel %vm502, %v495, 0
        %v513 = vsel %vm502, %v496, 0
        %v516 = vsel %vm502, %v497, 0
        %v519 = vsel %vm502, %v498, 0
        %v522 = vsel %vm502, %v499, 0
        %v525 = vsel %vm502, %v500, 0
        %527 = vmatpush.msra.mxu0 0.0
        %528 = vmatpush.msra.mxu0 0.0
        %529 = vmatpush.msra.mxu0 0.0
        %530 = vmatpush.msra.mxu0 0.0
        %531 = vmatpush.msra.mxu0 0.0
        %532 = vmatpush.msra.mxu0 0.0
        %533 = vmatpush.msra.mxu0 0.0
        %534 = vmatpush.msra.mxu0 0.0
        %535 = vmatpush.msra.mxu0 0.0
        %536 = vmatpush.msra.mxu0 0.0
        %537 = vmatpush.msra.mxu0 0.0
        %538 = vmatpush.msra.mxu0 0.0
        %539 = vmatpush.msra.mxu0 %v277
        %540 = vmatpush.msra.mxu0 %v276
        %541 = vmatpush.msra.mxu0 %v275
        %542 = vmatpush.msra.mxu0 %v274
        %543 = vmatmul.f32.gmra.mxu0 %v504
        %v544 = vpop.f32.mrf.mxu0
        %v545 = vadd.f32 %v501, %v544
        %546 = vmatmul.f32.gmra.mxu0 %v507
        %v547 = vpop.f32.mrf.mxu0
        %v548 = vadd.f32 %v501, %v547
        %549 = vmatmul.f32.gmra.mxu0 %v510
        %v550 = vpop.f32.mrf.mxu0
        %v551 = vadd.f32 %v501, %v550
        %552 = vmatmul.f32.gmra.mxu0 %v513
        %v553 = vpop.f32.mrf.mxu0
        %v554 = vadd.f32 %v501, %v553
        %555 = vmatmul.f32.gmra.mxu0 %v516
        %v556 = vpop.f32.mrf.mxu0
        %v557 = vadd.f32 %v501, %v556
        %558 = vmatmul.f32.gmra.mxu0 %v519
        %v559 = vpop.f32.mrf.mxu0
        %v560 = vadd.f32 %v501, %v559
        %561 = vmatmul.f32.gmra.mxu0 %v522
        %v562 = vpop.f32.mrf.mxu0
        %v563 = vadd.f32 %v501, %v562
        %564 = vmatmul.f32.gmra.mxu0 %v525
        %v565 = vpop.f32.mrf.mxu0
        %v566 = vadd.f32 %v501, %v565
        %567 = vdwg.mxu0
        %v568 = vmax.f32 %v545, 0.0
        %v569 = vmax.f32 %v548, 0.0
        %v570 = vmax.f32 %v551, 0.0
        %v571 = vmax.f32 %v554, 0.0
        %v572 = vmax.f32 %v557, 0.0
        %v573 = vmax.f32 %v560, 0.0
        %v574 = vmax.f32 %v563, 0.0
        %v575 = vmax.f32 %v566, 0.0
        %v576 = vperm.slane %v278, 2
        %v577 = vmul.f32 %v568, %v576
        %v578 = vmul.f32 %v569, %v576
        %v579 = vmul.f32 %v570, %v576
        %v580 = vmul.f32 %v571, %v576
        %v581 = vmul.f32 %v572, %v576
        %v582 = vmul.f32 %v573, %v576
        %v583 = vmul.f32 %v574, %v576
        %v584 = vmul.f32 %v575, %v576
        %v585 = vperm.slane %v278, 3
        %v586 = vadd.f32 %v577, %v585
        %v587 = vadd.f32 %v578, %v585
        %v588 = vadd.f32 %v579, %v585
        %v589 = vadd.f32 %v580, %v585
        %v590 = vadd.f32 %v581, %v585
        %v591 = vadd.f32 %v582, %v585
        %v592 = vadd.f32 %v583, %v585
        %v593 = vadd.f32 %v584, %v585
        %v594 = vmax.f32 %v586, 0.0
        %v595 = vmax.f32 %v587, 0.0
        %v596 = vmax.f32 %v588, 0.0
        %v597 = vmax.f32 %v589, 0.0
        %v598 = vmax.f32 %v590, 0.0
        %v599 = vmax.f32 %v591, 0.0
        %v600 = vmax.f32 %v592, 0.0
        %v601 = vmax.f32 %v593, 0.0
        %v602 = vsel %vm502, %v594, -inf
        %v603 = vsel %vm502, %v595, -inf
        %v604 = vsel %vm502, %v596, -inf
        %v605 = vsel %vm502, %v597, -inf
        %v606 = vsel %vm502, %v598, -inf
        %v607 = vmax.f32 %v602, %v606
        %v608 = vsel %vm502, %v599, -inf
        %v609 = vmax.f32 %v603, %v608
        %v610 = vsel %vm502, %v600, -inf
        %v611 = vmax.f32 %v604, %v610
        %v612 = vsel %vm502, %v601, -inf
        %v613 = vmax.f32 %v605, %v612
        %v614 = vmax.f32 %v607, %v609
        %v615 = vmax.f32 %v611, %v613
        %v616 = vmax.f32 %v614, %v615
        %v617 = vrot.slane %v616, 4
        %v618 = vmax.f32 %v616, %v617
        %v619 = vrot.slane %v618, 2
        %v620 = vmax.f32 %v618, %v619
        %v621 = vrot.slane %v620, 1
        %v622 = vmax.f32 %v620, %v621
        %v624 = vsel %vm502, %v622, 0
        %626 = vmatpush.msra.mxu0 0.0
        %627 = vmatpush.msra.mxu0 0.0
        %628 = vmatpush.msra.mxu0 0.0
        %629 = vmatpush.msra.mxu0 0.0
        %630 = vmatpush.msra.mxu0 0.0
        %631 = vmatpush.msra.mxu0 0.0
        %632 = vmatpush.msra.mxu0 0.0
        %633 = vmatpush.msra.mxu0 0.0
        %634 = vmatpush.msra.mxu0 0.0
        %635 = vmatpush.msra.mxu0 0.0
        %636 = vmatpush.msra.mxu0 0.0
        %637 = vmatpush.msra.mxu0 0.0
        %638 = vmatpush.msra.mxu0 %v293
        %639 = vmatpush.msra.mxu0 %v292
        %640 = vmatpush.msra.mxu0 %v291
        %641 = vmatpush.msra.mxu0 %v290
        %642 = vmatmul.f32.gmra.mxu0 %v624
        %v643 = vpop.f32.mrf.mxu0
        %v644 = vadd.f32 0.0, %v643
        %645 = vdwg.mxu0
        %v646 = vadd.f32 %v344, %v644
        %v647 = vpack.c.bf16 %v595, %v594
        %v648 = vpack.c.bf16 %v597, %v596
        %v649 = vpack.c.bf16 %v599, %v598
        %v650 = vpack.c.bf16 %v601, %v600
        %651 = vmatpush.bf16.msra.mxu0 0
        %652 = vmatpush.bf16.msra.mxu0 0
        %653 = vmatpush.bf16.msra.mxu0 0
        %654 = vmatpush.bf16.msra.mxu0 0
        %655 = vmatpush.bf16.msra.mxu0 %v650
        %656 = vmatpush.bf16.msra.mxu0 %v649
        %657 = vmatpush.bf16.msra.mxu0 %v648
        %658 = vmatpush.bf16.msra.mxu0 %v647
        %659 = vmatmul.bf16.gmra.mxu0 %v371
        %v660 = vpop.f32.mrf.mxu0
        %v661 = vadd.f32 0.0, %v660
        %v662 = vpop.f32.mrf.mxu0
        %v663 = vadd.f32 0.0, %v662
        %664 = vmatmul.bf16.gmra.mxu0 %v374
        %v665 = vpop.f32.mrf.mxu0
        %v666 = vadd.f32 0.0, %v665
        %v667 = vpop.f32.mrf.mxu0
        %v668 = vadd.f32 0.0, %v667
        %669 = vmatmul.bf16.gmra.mxu0 %v377
        %v670 = vpop.f32.mrf.mxu0
        %v671 = vadd.f32 0.0, %v670
        %v672 = vpop.f32.mrf.mxu0
        %v673 = vadd.f32 0.0, %v672
        %674 = vmatmul.bf16.gmra.mxu0 %v380
        %v675 = vpop.f32.mrf.mxu0
        %v676 = vadd.f32 0.0, %v675
        %v677 = vpop.f32.mrf.mxu0
        %v678 = vadd.f32 0.0, %v677
        %679 = vdwg.mxu0
        %v680 = vmul.f32 %v594, 1.2
        %v681 = vmul.f32 %v595, 1.2
        %v682 = vmul.f32 %v596, 1.2
        %v683 = vmul.f32 %v597, 1.2
        %v684 = vmul.f32 %v598, 1.2
        %v685 = vmul.f32 %v599, 1.2
        %v686 = vmul.f32 %v600, 1.2
        %v687 = vmul.f32 %v601, 1.2
        %v688 = vadd.f32 %v680, %v661
        %v689 = vadd.f32 %v681, %v663
        %v690 = vadd.f32 %v682, %v666
        %v691 = vadd.f32 %v683, %v668
        %v692 = vadd.f32 %v684, %v671
        %v693 = vadd.f32 %v685, %v673
        %v694 = vadd.f32 %v686, %v676
        %v695 = vadd.f32 %v687, %v678
        %v696 = vperm.slane %v287, 0
        %v698 = vsel %vm502, %v688, 0
        %v701 = vsel %vm502, %v689, 0
        %v704 = vsel %vm502, %v690, 0
        %v707 = vsel %vm502, %v691, 0
        %v710 = vsel %vm502, %v692, 0
        %v713 = vsel %vm502, %v693, 0
        %v716 = vsel %vm502, %v694, 0
        %v719 = vsel %vm502, %v695, 0
        %721 = vmatpush.msra.mxu0 0.0
        %722 = vmatpush.msra.mxu0 0.0
        %723 = vmatpush.msra.mxu0 0.0
        %724 = vmatpush.msra.mxu0 0.0
        %725 = vmatpush.msra.mxu0 0.0
        %726 = vmatpush.msra.mxu0 0.0
        %727 = vmatpush.msra.mxu0 0.0
        %728 = vmatpush.msra.mxu0 0.0
        %729 = vmatpush.msra.mxu0 0.0
        %730 = vmatpush.msra.mxu0 0.0
        %731 = vmatpush.msra.mxu0 0.0
        %732 = vmatpush.msra.mxu0 0.0
        %733 = vmatpush.msra.mxu0 %v282
        %734 = vmatpush.msra.mxu0 %v281
        %735 = vmatpush.msra.mxu0 %v280
        %736 = vmatpush.msra.mxu0 %v279
        %737 = vmatmul.f32.gmra.mxu0 %v698
        %v738 = vpop.f32.mrf.mxu0
        %v739 = vadd.f32 %v696, %v738
        %740 = vmatmul.f32.gmra.mxu0 %v701
        %v741 = vpop.f32.mrf.mxu0
        %v742 = vadd.f32 %v696, %v741
        %743 = vmatmul.f32.gmra.mxu0 %v704
        %v744 = vpop.f32.mrf.mxu0
        %v745 = vadd.f32 %v696, %v744
        %746 = vmatmul.f32.gmra.mxu0 %v707
        %v747 = vpop.f32.mrf.mxu0
        %v748 = vadd.f32 %v696, %v747
        %749 = vmatmul.f32.gmra.mxu0 %v710
        %v750 = vpop.f32.mrf.mxu0
        %v751 = vadd.f32 %v696, %v750
        %752 = vmatmul.f32.gmra.mxu0 %v713
        %v753 = vpop.f32.mrf.mxu0
        %v754 = vadd.f32 %v696, %v753
        %755 = vmatmul.f32.gmra.mxu0 %v716
        %v756 = vpop.f32.mrf.mxu0
        %v757 = vadd.f32 %v696, %v756
        %758 = vmatmul.f32.gmra.mxu0 %v719
        %v759 = vpop.f32.mrf.mxu0
        %v760 = vadd.f32 %v696, %v759
        %761 = vdwg.mxu0
        %v762 = vmax.f32 %v739, 0.0
        %v763 = vmax.f32 %v742, 0.0
        %v764 = vmax.f32 %v745, 0.0
        %v765 = vmax.f32 %v748, 0.0
        %v766 = vmax.f32 %v751, 0.0
        %v767 = vmax.f32 %v754, 0.0
        %v768 = vmax.f32 %v757, 0.0
        %v769 = vmax.f32 %v760, 0.0
        %v770 = vperm.slane %v287, 1
        %v772 = vsel %vm502, %v762, 0
        %v775 = vsel %vm502, %v763, 0
        %v778 = vsel %vm502, %v764, 0
        %v781 = vsel %vm502, %v765, 0
        %v784 = vsel %vm502, %v766, 0
        %v787 = vsel %vm502, %v767, 0
        %v790 = vsel %vm502, %v768, 0
        %v793 = vsel %vm502, %v769, 0
        %795 = vmatpush.msra.mxu0 0.0
        %796 = vmatpush.msra.mxu0 0.0
        %797 = vmatpush.msra.mxu0 0.0
        %798 = vmatpush.msra.mxu0 0.0
        %799 = vmatpush.msra.mxu0 0.0
        %800 = vmatpush.msra.mxu0 0.0
        %801 = vmatpush.msra.mxu0 0.0
        %802 = vmatpush.msra.mxu0 0.0
        %803 = vmatpush.msra.mxu0 0.0
        %804 = vmatpush.msra.mxu0 0.0
        %805 = vmatpush.msra.mxu0 0.0
        %806 = vmatpush.msra.mxu0 0.0
        %807 = vmatpush.msra.mxu0 %v286
        %808 = vmatpush.msra.mxu0 %v285
        %809 = vmatpush.msra.mxu0 %v284
        %810 = vmatpush.msra.mxu0 %v283
        %811 = vmatmul.f32.gmra.mxu0 %v772
        %v812 = vpop.f32.mrf.mxu0
        %v813 = vadd.f32 %v770, %v812
        %814 = vmatmul.f32.gmra.mxu0 %v775
        %v815 = vpop.f32.mrf.mxu0
        %v816 = vadd.f32 %v770, %v815
        %817 = vmatmul.f32.gmra.mxu0 %v778
        %v818 = vpop.f32.mrf.mxu0
        %v819 = vadd.f32 %v770, %v818
        %820 = vmatmul.f32.gmra.mxu0 %v781
        %v821 = vpop.f32.mrf.mxu0
        %v822 = vadd.f32 %v770, %v821
        %823 = vmatmul.f32.gmra.mxu0 %v784
        %v824 = vpop.f32.mrf.mxu0
        %v825 = vadd.f32 %v770, %v824
        %826 = vmatmul.f32.gmra.mxu0 %v787
        %v827 = vpop.f32.mrf.mxu0
        %v828 = vadd.f32 %v770, %v827
        %829 = vmatmul.f32.gmra.mxu0 %v790
        %v830 = vpop.f32.mrf.mxu0
        %v831 = vadd.f32 %v770, %v830
        %832 = vmatmul.f32.gmra.mxu0 %v793
        %v833 = vpop.f32.mrf.mxu0
        %v834 = vadd.f32 %v770, %v833
        %835 = vdwg.mxu0
        %v836 = vmax.f32 %v813, 0.0
        %v837 = vmax.f32 %v816, 0.0
        %v838 = vmax.f32 %v819, 0.0
        %v839 = vmax.f32 %v822, 0.0
        %v840 = vmax.f32 %v825, 0.0
        %v841 = vmax.f32 %v828, 0.0
        %v842 = vmax.f32 %v831, 0.0
        %v843 = vmax.f32 %v834, 0.0
        %v844 = vperm.slane %v287, 2
        %v845 = vmul.f32 %v836, %v844
        %v846 = vmul.f32 %v837, %v844
        %v847 = vmul.f32 %v838, %v844
        %v848 = vmul.f32 %v839, %v844
        %v849 = vmul.f32 %v840, %v844
        %v850 = vmul.f32 %v841, %v844
        %v851 = vmul.f32 %v842, %v844
        %v852 = vmul.f32 %v843, %v844
        %v853 = vperm.slane %v287, 3
        %v854 = vadd.f32 %v845, %v853
        %v855 = vadd.f32 %v846, %v853
        %v856 = vadd.f32 %v847, %v853
        %v857 = vadd.f32 %v848, %v853
        %v858 = vadd.f32 %v849, %v853
        %v859 = vadd.f32 %v850, %v853
        %v860 = vadd.f32 %v851, %v853
        %v861 = vadd.f32 %v852, %v853
        %v862 = vmax.f32 %v854, 0.0
        %v863 = vmax.f32 %v855, 0.0
        %v864 = vmax.f32 %v856, 0.0
        %v865 = vmax.f32 %v857, 0.0
        %v866 = vmax.f32 %v858, 0.0
        %v867 = vmax.f32 %v859, 0.0
        %v868 = vmax.f32 %v860, 0.0
        %v869 = vmax.f32 %v861, 0.0
        %v870 = vsel %vm502, %v862, -inf
        %v871 = vsel %vm502, %v863, -inf
        %v872 = vsel %vm502, %v864, -inf
        %v873 = vsel %vm502, %v865, -inf
        %v874 = vsel %vm502, %v866, -inf
        %v875 = vmax.f32 %v870, %v874
        %v876 = vsel %vm502, %v867, -inf
        %v877 = vmax.f32 %v871, %v876
        %v878 = vsel %vm502, %v868, -inf
        %v879 = vmax.f32 %v872, %v878
        %v880 = vsel %vm502, %v869, -inf
        %v881 = vmax.f32 %v873, %v880
        %v882 = vmax.f32 %v875, %v877
        %v883 = vmax.f32 %v879, %v881
        %v884 = vmax.f32 %v882, %v883
        %v885 = vrot.slane %v884, 4
        %v886 = vmax.f32 %v884, %v885
        %v887 = vrot.slane %v886, 2
        %v888 = vmax.f32 %v886, %v887
        %v889 = vrot.slane %v888, 1
        %v890 = vmax.f32 %v888, %v889
        %891 = vst.msk [vmem:[%s254] sm:$0xff] %vm502, %v862
        %892 = vst.msk [vmem:[%s254 + $0x8] sm:$0xff] %vm502, %v863
        %893 = vst.msk [vmem:[%s254 + $0x10] sm:$0xff] %vm502, %v864
        %894 = vst.msk [vmem:[%s254 + $0x18] sm:$0xff] %vm502, %v865
        %895 = vst.msk [vmem:[%s254 + $0x20] sm:$0xff] %vm502, %v866
        %896 = vst.msk [vmem:[%s254 + $0x28] sm:$0xff] %vm502, %v867
        %897 = vst.msk [vmem:[%s254 + $0x30] sm:$0xff] %vm502, %v868
        %898 = vst.msk [vmem:[%s254 + $0x38] sm:$0xff] %vm502, %v869
        %v900 = vsel %vm502, %v890, 0
        %902 = vmatpush.msra.mxu0 0.0
        %903 = vmatpush.msra.mxu0 0.0
        %904 = vmatpush.msra.mxu0 0.0
        %905 = vmatpush.msra.mxu0 0.0
        %906 = vmatpush.msra.mxu0 0.0
        %907 = vmatpush.msra.mxu0 0.0
        %908 = vmatpush.msra.mxu0 0.0
        %909 = vmatpush.msra.mxu0 0.0
        %910 = vmatpush.msra.mxu0 0.0
        %911 = vmatpush.msra.mxu0 0.0
        %912 = vmatpush.msra.mxu0 0.0
        %913 = vmatpush.msra.mxu0 0.0
        %914 = vmatpush.msra.mxu0 %v297
        %915 = vmatpush.msra.mxu0 %v296
        %916 = vmatpush.msra.mxu0 %v295
        %917 = vmatpush.msra.mxu0 %v294
        %918 = vmatmul.f32.gmra.mxu0 %v900
        %v919 = vpop.f32.mrf.mxu0
        %v920 = vadd.f32 0.0, %v919
        %921 = vdwg.mxu0
        %v922 = vadd.f32 %v646, %v920
        %vm923 = vcmask 57344
        %924 = vst.msk [vmem:[%s239] sm:$0x1] %vm923, %v922
        %p925 = scmp.lt.s32.totalorder %s20, 3
        %s926 = scalar_select %p925, %s20, 3
        %s927 = smul.addr %s926, 8
        %s928 = smul.addr %s927, 8
        %s929 = scalar_lea.vmem %s4, %s928
        %s930 = sand.u32 %s148, 1
        %s931 = scalar_lea.sflag [#allocation3], %s930
        %s932 = sand.u32 %s148, 1
        %s933 = scalar_lea.vmem [#allocation2], %s932
        // Predicated region
        $region37: #{uvnet_graph_forward.1} parent=35 // pred_check
          %p934 = pneg %p132
        $region38: #{uvnet_graph_forward.1} parent=35 // pred_check_branch
          %936 = sbr.rel (%p934) target = $region40
        $region39: #{uvnet_graph_forward.1} parent=35 // pred_region
          _
        $region40: #{uvnet_graph_forward.1} parent=35 // pred_fallthru
          _
        // Predicated region
        $region41: #{uvnet_graph_forward.1} parent=35 // pred_check
          %p937 = pneg %p158
        $region42: #{uvnet_graph_forward.1} parent=35 // pred_check_branch
          %939 = sbr.rel (%p937) target = $region44
        $region43: #{uvnet_graph_forward.1} parent=35 // pred_region
          %941 = vsyncadd %s931, 0
          %s942 = scalar_lea.hbm %s5, %s20
          %s944 = sshll.u32 %s933, 4
          %s945 = int_to_ptr.vmem [resolvable:$true] %s944
          %s946 = sshll.u32 %s942, 4
          %s947 = int_to_ptr.hbm [resolvable:$true] %s946
          %949 = dma.vmem_to_hbm [thread:$0]  %s945, 16, %s947, %s931
        $region44: #{uvnet_graph_forward.1} parent=35 // pred_fallthru
          _
      $region36: #{uvnet_graph_forward.1} parent=5 // pred_fallthru
        _
      %p950 = scmp.le.s32.totalorder 2, %s15
      // Predicated region
      $region45: #{uvnet_graph_forward.1} parent=5 // pred_check
        %p951 = pneg %p950
      $region46: #{uvnet_graph_forward.1} parent=5 // pred_check_branch
        %953 = sbr.rel (%p951) target = $region48
      $region47: #{uvnet_graph_forward.1} parent=5 // pred_region
        %s954 = ssub.s32 %s15, 2
        // Predicated region
        $region49: #{uvnet_graph_forward.1} parent=47 // pred_check
          %p955 = pneg %p138
        $region50: #{uvnet_graph_forward.1} parent=47 // pred_check_branch
          %957 = sbr.rel (%p955) target = $region52
        $region51: #{uvnet_graph_forward.1} parent=47 // pred_region
          %p958 = scmp.lt.s32.totalorder %s21, 3
          %s959 = scalar_select %p958, %s21, 3
          %s960 = smul.addr %s959, 8
          %s961 = smul.addr %s960, 8
          %s962 = scalar_lea.vmem %s4, %s961
        $region52: #{uvnet_graph_forward.1} parent=47 // pred_fallthru
          _
        // Predicated region
        $region53: #{uvnet_graph_forward.1} parent=47 // pred_check
          %p963 = pneg %p164
        $region54: #{uvnet_graph_forward.1} parent=47 // pred_check_branch
          %965 = sbr.rel (%p963) target = $region56
        $region55: #{uvnet_graph_forward.1} parent=47 // pred_region
          %s966 = sand.u32 %s149, 1
          %s967 = scalar_lea.sflag [#allocation3], %s966
          %s968 = sand.u32 %s149, 1
          %s969 = scalar_lea.vmem [#allocation2], %s968
          %971 = dma.done %s967, 16
        $region56: #{uvnet_graph_forward.1} parent=47 // pred_fallthru
          _
      $region48: #{uvnet_graph_forward.1} parent=5 // pred_fallthru
        _
    $region6: #{uvnet_graph_forward.1} parent=1 // loop_footer
      %s19 = sadd.s32 1, %s15
    $region7: #{uvnet_graph_forward.1} parent=1 // loop_footer_branch
      %14 = sbr.rel target = $region3
    $region8: #{uvnet_graph_forward.1} parent=1 // loop_exit
      _
    %972 = vsyncpa [#allocation3], 1
    %s973 = scalar_lea.sflag [#allocation3], 1
    %974 = vsyncpa %s973, 1

</llo_original>
